<compile_context>
chip_gen: v7x
topology: tpu7x:2x2x1
jax: 0.10.0
libtpu: 0.0.40
codegen_flags: <defaults>
</compile_context>

<pallas_src>
import functools

import numpy as np
import jax
import jax.numpy as jnp
from jax import lax
from jax.experimental import pallas as pl
from jax.experimental.pallas import tpu as pltpu


# ---------------------------------------------------------------------------
# Fused kernel (one batch image per grid step; all intermediates in VMEM)
# ---------------------------------------------------------------------------
def _basic_block_kernel(*refs, identity_sc):
    if identity_sc:
        (x_ref, w1_ref, b1_ref, w2_ref, b2_ref,
         out_ref, im1_ref, im2_ref) = refs
    else:
        (xe_ref, xo_ref, w1_ref, b1_ref, w2_ref, b2_ref, psc_ref,
         out_ref, im1_ref, im2_ref) = refs

    h = out_ref.shape[1]                  # output rows for this image
    wc_in = im1_ref.shape[1] // 3         # W  * Cin   (lane-dense)
    wc_mid = im2_ref.shape[1] // 3        # W1 * planes (lane-dense)
    mxu_dtype = w1_ref.dtype

    zin = jnp.zeros((1, wc_in), im1_ref.dtype)
    zmid = jnp.zeros((1, wc_mid), im2_ref.dtype)

    # ---- conv1 im2col: vertical taps become lane blocks; only the two halo
    #      rows are zeroed (not the whole buffer) ----
    if identity_sc:
        xv = x_ref[0]                                     # (h, wc_in) f32
        im1_ref[0:1, 0:wc_in] = zin                       # top halo (tap kh=0)
        im1_ref[1:h, 0:wc_in] = xv[0:h - 1]
        im1_ref[:, wc_in:2 * wc_in] = xv                  # tap kh=1
        im1_ref[0:h - 1, 2 * wc_in:3 * wc_in] = xv[1:h]   # tap kh=2
        im1_ref[h - 1:h, 2 * wc_in:3 * wc_in] = zin       # bottom halo
    else:
        # Vertical stride 2 folded away: even/odd input rows arrive separately,
        # so conv1 only computes the h_out rows that are kept.
        xe = xe_ref[0]                                    # x rows 0,2,4,...
        xo = xo_ref[0]                                    # x rows 1,3,5,...
        im1_ref[0:1, 0:wc_in] = zin                       # top halo (tap kh=0)
        im1_ref[1:h, 0:wc_in] = xo[0:h - 1]               # row 2*ho-1
        im1_ref[:, wc_in:2 * wc_in] = xe                  # row 2*ho
        im1_ref[:, 2 * wc_in:3 * wc_in] = xo              # row 2*ho+1

    # ---- conv1 (+ folded BN scale) + bias + relu: single bf16 MXU matmul,
    #      K = 3*W*Cin, f32 accumulate ----
    acc1 = jnp.dot(im1_ref[...].astype(mxu_dtype), w1_ref[...],
                   preferred_element_type=jnp.float32)
    y = jnp.maximum(acc1 + b1_ref[...], 0.0)              # f32 elementwise

    # ---- conv2 im2col (stride 1) ----
    im2_ref[0:1, 0:wc_mid] = zmid
    im2_ref[1:h, 0:wc_mid] = y[0:h - 1]
    im2_ref[:, wc_mid:2 * wc_mid] = y
    im2_ref[0:h - 1, 2 * wc_mid:3 * wc_mid] = y[1:h]
    im2_ref[h - 1:h, 2 * wc_mid:3 * wc_mid] = zmid

    acc2 = jnp.dot(im2_ref[...].astype(mxu_dtype), w2_ref[...],
                   preferred_element_type=jnp.float32)
    z = acc2 + b2_ref[...]                                 # bn2 (scale folded)

    # ---- shortcut ----
    if identity_sc:
        res = xv
    else:
        # ::2 width subsample + channel zero-pad as one tiny 0/1 selection
        # matmul on the even rows (exact in bf16).
        res = jnp.dot(xe.astype(mxu_dtype), psc_ref[...],
                      preferred_element_type=jnp.float32)

    out_ref[0] = jnp.maximum(z + res, 0.0).astype(out_ref.dtype)


# ---------------------------------------------------------------------------
# One-time parameter preparation (folded weights, biases, selection matrices)
# ---------------------------------------------------------------------------
def _fold_conv_weight(w_hwio, w_in, w_out, stride):
    """Fold horizontal taps + padding=1 + horizontal stride into a block matrix
    of shape (3*w_in*Cin, w_out*Cout); rows are (kh, wi, ci), cols (wo, co)."""
    k_h, k_w, cin, cout = w_hwio.shape
    sel = np.zeros((k_w, w_in, w_out), np.float32)
    for kj in range(k_w):
        for wo in range(w_out):
            wi = stride * wo + kj - 1              # padding = 1 (zeros outside)
            if 0 <= wi < w_in:
                sel[kj, wi, wo] = 1.0
    big = jnp.einsum("jaw,kjio->kaiwo", jnp.asarray(sel),
                     w_hwio.astype(jnp.float32),
                     precision=lax.Precision.HIGHEST)
    return big.reshape(k_h * w_in * cin, w_out * cout)


def _shortcut_proj(w_in, cin, planes):
    """(w_in*cin, w_out*planes) 0/1 matrix: ::2 width subsample + channel pad."""
    w_out = (w_in - 1) // 2 + 1
    pad = planes // 4
    p = np.zeros((w_in * cin, w_out * planes), np.float32)
    for wo in range(w_out):
        for ci in range(cin):
            p[2 * wo * cin + ci, wo * planes + pad + ci] = 1.0
    return jnp.asarray(p)


def prepare_basic_block(params, *, in_planes, planes, stride, h, w,
                        mxu_dtype=jnp.bfloat16):
    """Build folded/pre-cast weights once; pass the result to every forward."""
    identity_sc = (stride == 1 and in_planes == planes)
    if not identity_sc:
        if (stride != 2 or in_planes + 2 * (planes // 4) != planes
                or h % 2 != 0 or w % 2 != 0):
            raise NotImplementedError(
                "option-'A' shortcut supported for stride=2, even H/W, and "
                "planes == in_planes + 2*(planes//4)")
    h_out = (h - 1) // stride + 1
    w_out = (w - 1) // stride + 1

    # Fold the (inference-mode) BN scale into the conv weights.
    w1s = params["w1"].astype(jnp.float32) * params["scale1"].astype(jnp.float32)
    w2s = params["w2"].astype(jnp.float32) * params["scale2"].astype(jnp.float32)

    prep = dict(
        identity=identity_sc, in_planes=in_planes, planes=planes,
        stride=stride, h=h, w=w, h_out=h_out, w_out=w_out, mxu_dtype=mxu_dtype,
        w1=_fold_conv_weight(w1s, w, w_out, stride).astype(mxu_dtype),
        w2=_fold_conv_weight(w2s, w_out, w_out, 1).astype(mxu_dtype),
        b1=jnp.tile(params["bias1"].astype(jnp.float32), w_out).reshape(1, -1),
        b2=jnp.tile(params["bias2"].astype(jnp.float32), w_out).reshape(1, -1),
    )
    if not identity_sc:
        prep["psc"] = _shortcut_proj(w, in_planes, planes).astype(mxu_dtype)
    return prep


# ---------------------------------------------------------------------------
# BasicBlock forward
# ---------------------------------------------------------------------------
def basic_block_forward(x_nchw, prep):
    n, cin, h, w = x_nchw.shape
    assert cin == prep["in_planes"] and h == prep["h"] and w == prep["w"]
    planes, h_out, w_out = prep["planes"], prep["h_out"], prep["w_out"]
    wc_in = w * cin
    wc_out = w_out * planes

    # NCHW -> lane-dense (N, H, W*C).
    x = jnp.transpose(x_nchw, (0, 2, 3, 1)).reshape(n, h, wc_in)
    x = x.astype(jnp.float32)

    if prep["identity"]:
        act_args = [x]
        act_specs = [pl.BlockSpec((1, h, wc_in), lambda i: (i, 0, 0))]
    else:
        # Even/odd row split (wrapper-side strided slice) so the kernel only
        # computes the kept rows; no row-selection matmul, half the conv1 work.
        act_args = [x[:, 0::2, :], x[:, 1::2, :]]
        act_specs = [pl.BlockSpec((1, h_out, wc_in), lambda i: (i, 0, 0)),
                     pl.BlockSpec((1, h_out, wc_in), lambda i: (i, 0, 0))]

    const_args = [prep["w1"], prep["b1"], prep["w2"], prep["b2"]]
    if not prep["identity"]:
        const_args.append(prep["psc"])

    def const_spec(a):
        nd = a.ndim
        return pl.BlockSpec(a.shape, lambda i, _nd=nd: (0,) * _nd)

    out = pl.pallas_call(
        functools.partial(_basic_block_kernel, identity_sc=prep["identity"]),
        out_shape=jax.ShapeDtypeStruct((n, h_out, wc_out), x_nchw.dtype),
        grid=(n,),
        in_specs=act_specs + [const_spec(a) for a in const_args],
        out_specs=pl.BlockSpec((1, h_out, wc_out), lambda i: (i, 0, 0)),
        scratch_shapes=[
            pltpu.VMEM((h_out, 3 * wc_in), jnp.float32),    # conv1 im2col
            pltpu.VMEM((h_out, 3 * wc_out), jnp.float32),   # conv2 im2col
        ],
        compiler_params=pltpu.CompilerParams(
            dimension_semantics=("parallel",)),
    )(*(act_args + const_args))

    out = out.reshape(n, h_out, w_out, planes)
    return jnp.transpose(out, (0, 3, 1, 2))                # NHWC -> NCHW


# ---------------------------------------------------------------------------
# Deterministic parameters + pure-JAX references for verification
# ---------------------------------------------------------------------------
def make_params(key, in_planes, planes):
    ks = jax.random.split(key, 10)
    eps = 1e-5

    def bn_fold(kg, kb, km, kv, c):
        gamma = 1.0 + 0.1 * jax.random.normal(kg, (c,), jnp.float32)
        beta = 0.1 * jax.random.normal(kb, (c,), jnp.float32)
        mean = 0.1 * jax.random.normal(km, (c,), jnp.float32)
        var = 0.5 + 0.5 * jnp.abs(jax.random.normal(kv, (c,), jnp.float32))
        scale = gamma / jnp.sqrt(var + eps)
        bias = beta - mean * scale
        return scale, bias

    w1 = 0.1 * jax.random.normal(ks[0], (3, 3, in_planes, planes), jnp.float32)
    w2 = 0.1 * jax.random.normal(ks[1], (3, 3, planes, planes), jnp.float32)
    scale1, bias1 = bn_fold(ks[2], ks[3], ks[4], ks[5], planes)
    scale2, bias2 = bn_fold(ks[6], ks[7], ks[8], ks[9], planes)
    return dict(w1=w1, w2=w2, scale1=scale1, bias1=bias1,
                scale2=scale2, bias2=bias2)


def reference_forward(x_nchw, params, *, in_planes, planes, stride,
                      mxu_dtype=None):
    """f32 reference.  If mxu_dtype is set, matmul operands are rounded to that
    dtype exactly like the kernel does (bf16-in / f32-accumulate semantics)."""
    f32 = jnp.float32

    def q(a):
        return a.astype(mxu_dtype).astype(f32) if mxu_dtype is not None else a

    x = jnp.transpose(x_nchw, (0, 2, 3, 1)).astype(f32)
    w1 = q(params["w1"].astype(f32) * params["scale1"].astype(f32))
    w2 = q(params["w2"].astype(f32) * params["scale2"].astype(f32))

    def conv(z, wt, s):
        return lax.conv_general_dilated(
            z, wt, window_strides=(s, s), padding=((1, 1), (1, 1)),
            dimension_numbers=("NHWC", "HWIO", "NHWC"),
            precision=lax.Precision.HIGHEST)

    y = jnp.maximum(conv(q(x), w1, stride) + params["bias1"], 0.0)
    z = conv(q(y), w2, 1) + params["bias2"]
    if stride != 1 or in_planes != planes:
        sc = q(x)[:, ::2, ::2, :]                      # kernel uses bf16 rows here
        pad = planes // 4
        sc = jnp.pad(sc, ((0, 0), (0, 0), (0, 0), (pad, pad)))
    else:
        sc = x                                         # identity residual is f32
    out = jnp.maximum(z + sc, 0.0)
    return jnp.transpose(out, (0, 3, 1, 2))


if __name__ == "__main__":
    key = jax.random.PRNGKey(0)
    k_x, k_p1, k_p2 = jax.random.split(key, 3)

    # Case 1: identity shortcut (in_planes == planes, stride 1)
    x1 = jax.random.normal(k_x, (2, 8, 16, 16), jnp.float32)   # NCHW
    p1 = make_params(k_p1, in_planes=8, planes=8)
    prep1 = prepare_basic_block(p1, in_planes=8, planes=8, stride=1, h=16, w=16)
    out1 = basic_block_forward(x1, prep1)

    # Case 2: option-'A' shortcut (stride 2, channel expansion 8 -> 16)
    p2 = make_params(k_p2, in_planes=8, planes=16)
    prep2 = prepare_basic_block(p2, in_planes=8, planes=16, stride=2, h=16, w=16)
    out2 = basic_block_forward(x1, prep2)

    jax.block_until_ready((out1, out2))
    assert out1.shape == (2, 8, 16, 16) and out2.shape == (2, 16, 8, 8)

    # Tight check against a reference with the same bf16-operand / f32-acc
    # matmul semantics as the kernel (isolates structural correctness).
    ref1_q = reference_forward(x1, p1, in_planes=8, planes=8, stride=1,
                               mxu_dtype=jnp.bfloat16)
    ref2_q = reference_forward(x1, p2, in_planes=8, planes=16, stride=2,
                               mxu_dtype=jnp.bfloat16)
    assert float(jnp.max(jnp.abs(out1 - ref1_q))) < 2e-2, "case 1 mismatch (bf16 ref)"
    assert float(jnp.max(jnp.abs(out2 - ref2_q))) < 2e-2, "case 2 mismatch (bf16 ref)"

    # Loose check against the pure-f32 module semantics (bf16 MXU rounding only).
    ref1_f = reference_forward(x1, p1, in_planes=8, planes=8, stride=1)
    ref2_f = reference_forward(x1, p2, in_planes=8, planes=16, stride=2)
    assert float(jnp.max(jnp.abs(out1 - ref1_f))) < 2e-1, "case 1 drift vs f32 ref"
    assert float(jnp.max(jnp.abs(out2 - ref2_f))) < 2e-1, "case 2 drift vs f32 ref"

    print("KERNEL_OK")
</pallas_src>

<mosaic_0001>
module attributes {stable_mosaic.version = 11 : i64} {
  func.func @_basic_block_kernel(%arg0: i32, %arg1: memref<1x16x128xf32, #tpu.memory_space<vmem>>, %arg2: memref<384x128xbf16, #tpu.memory_space<vmem>>, %arg3: memref<1x128xf32, #tpu.memory_space<vmem>>, %arg4: memref<384x128xbf16, #tpu.memory_space<vmem>>, %arg5: memref<1x128xf32, #tpu.memory_space<vmem>>, %arg6: memref<1x16x128xf32, #tpu.memory_space<vmem>>, %arg7: memref<16x384xf32, #tpu.memory_space<vmem>>, %arg8: memref<16x384xf32, #tpu.memory_space<vmem>>) attributes {dimension_semantics = [#tpu.dimension_semantics<parallel>], iteration_bounds = array<i64: 2>, scalar_prefetch = 0 : i64, scratch_operands = 2 : i64, tpu.core_type = #tpu.core_type<tc>, window_params = [{transform_indices = @transform_0, window_bounds = array<i64: 1, 16, 128>}, {pipeline_mode = #tpu.pipeline_mode<synchronous>, transform_indices = @transform_1, window_bounds = array<i64: 384, 128>}, {pipeline_mode = #tpu.pipeline_mode<synchronous>, transform_indices = @transform_2, window_bounds = array<i64: 1, 128>}, {pipeline_mode = #tpu.pipeline_mode<synchronous>, transform_indices = @transform_3, window_bounds = array<i64: 384, 128>}, {pipeline_mode = #tpu.pipeline_mode<synchronous>, transform_indices = @transform_4, window_bounds = array<i64: 1, 128>}, {transform_indices = @transform_5, window_bounds = array<i64: 1, 16, 128>}]} {
    %cst = arith.constant 0.000000e+00 : f32
    %0 = vector.broadcast %cst : f32 to vector<1x128xf32>
    %cst_0 = arith.constant 0.000000e+00 : f32
    %1 = vector.broadcast %cst_0 : f32 to vector<1x128xf32>
    %c0 = arith.constant 0 : index
    %c0_1 = arith.constant 0 : index
    %c0_2 = arith.constant 0 : index
    %2 = vector.load %arg1[%c0, %c0_1, %c0_2] : memref<1x16x128xf32, #tpu.memory_space<vmem>>, vector<1x16x128xf32>
    %3 = vector.shape_cast %2 : vector<1x16x128xf32> to vector<16x128xf32>
    %c0_3 = arith.constant 0 : index
    %c0_4 = arith.constant 0 : index
    %4 = vector.load %arg7[%c0_3, %c0_4] : memref<16x384xf32, #tpu.memory_space<vmem>>, vector<1x128xf32>
    tpu.vector_store %arg7[%c0_3, %c0_4], %0 {strides = array<i32>} : memref<16x384xf32, #tpu.memory_space<vmem>>, vector<1x128xf32>,
    %5 = vector.extract_strided_slice %3 {offsets = [0, 0], sizes = [15, 128], strides = [1, 1]} : vector<16x128xf32> to vector<15x128xf32>
    %c1 = arith.constant 1 : index
    %c0_5 = arith.constant 0 : index
    %6 = vector.load %arg7[%c1, %c0_5] : memref<16x384xf32, #tpu.memory_space<vmem>>, vector<15x128xf32>
    tpu.vector_store %arg7[%c1, %c0_5], %5 {strides = array<i32>} : memref<16x384xf32, #tpu.memory_space<vmem>>, vector<15x128xf32>,
    %c0_6 = arith.constant 0 : index
    %c128 = arith.constant 128 : index
    %7 = vector.load %arg7[%c0_6, %c128] : memref<16x384xf32, #tpu.memory_space<vmem>>, vector<16x128xf32>
    tpu.vector_store %arg7[%c0_6, %c128], %3 {strides = array<i32>} : memref<16x384xf32, #tpu.memory_space<vmem>>, vector<16x128xf32>,
    %8 = vector.extract_strided_slice %3 {offsets = [1, 0], sizes = [15, 128], strides = [1, 1]} : vector<16x128xf32> to vector<15x128xf32>
    %c0_7 = arith.constant 0 : index
    %c256 = arith.constant 256 : index
    %9 = vector.load %arg7[%c0_7, %c256] : memref<16x384xf32, #tpu.memory_space<vmem>>, vector<15x128xf32>
    tpu.vector_store %arg7[%c0_7, %c256], %8 {strides = array<i32>} : memref<16x384xf32, #tpu.memory_space<vmem>>, vector<15x128xf32>,
    %c15 = arith.constant 15 : index
    %c256_8 = arith.constant 256 : index
    %10 = vector.load %arg7[%c15, %c256_8] : memref<16x384xf32, #tpu.memory_space<vmem>>, vector<1x128xf32>
    tpu.vector_store %arg7[%c15, %c256_8], %0 {strides = array<i32>} : memref<16x384xf32, #tpu.memory_space<vmem>>, vector<1x128xf32>,
    %c0_9 = arith.constant 0 : index
    %c0_10 = arith.constant 0 : index
    %11 = vector.load %arg7[%c0_9, %c0_10] : memref<16x384xf32, #tpu.memory_space<vmem>>, vector<16x384xf32>
    %12 = arith.truncf %11 : vector<16x384xf32> to vector<16x384xbf16>
    %c0_11 = arith.constant 0 : index
    %c0_12 = arith.constant 0 : index
    %13 = vector.load %arg2[%c0_11, %c0_12] : memref<384x128xbf16, #tpu.memory_space<vmem>>, vector<384x128xbf16>
    %cst_13 = arith.constant dense<0.000000e+00> : vector<16x128xf32>
    %14 = tpu.matmul %12, %13, %cst_13 {dimension_numbers = #tpu.dot_dimension_numbers<[1], [0], [0], [1], [0, 0, 1, 1], [], []>} : vector<16x384xbf16>, vector<384x128xbf16>, vector<16x128xf32> -> vector<16x128xf32>
    %c0_14 = arith.constant 0 : index
    %c0_15 = arith.constant 0 : index
    %15 = vector.load %arg3[%c0_14, %c0_15] : memref<1x128xf32, #tpu.memory_space<vmem>>, vector<1x128xf32>
    %16 = vector.broadcast %15 : vector<1x128xf32> to vector<16x128xf32>
    %17 = arith.addf %14, %16 : vector<16x128xf32>
    %cst_16 = arith.constant 0.000000e+00 : f32
    %18 = vector.broadcast %cst_16 : f32 to vector<16x128xf32>
    %19 = arith.maximumf %17, %18 : vector<16x128xf32>
    %c0_17 = arith.constant 0 : index
    %c0_18 = arith.constant 0 : index
    %20 = vector.load %arg8[%c0_17, %c0_18] : memref<16x384xf32, #tpu.memory_space<vmem>>, vector<1x128xf32>
    tpu.vector_store %arg8[%c0_17, %c0_18], %1 {strides = array<i32>} : memref<16x384xf32, #tpu.memory_space<vmem>>, vector<1x128xf32>,
    %21 = vector.extract_strided_slice %19 {offsets = [0, 0], sizes = [15, 128], strides = [1, 1]} : vector<16x128xf32> to vector<15x128xf32>
    %c1_19 = arith.constant 1 : index
    %c0_20 = arith.constant 0 : index
    %22 = vector.load %arg8[%c1_19, %c0_20] : memref<16x384xf32, #tpu.memory_space<vmem>>, vector<15x128xf32>
    tpu.vector_store %arg8[%c1_19, %c0_20], %21 {strides = array<i32>} : memref<16x384xf32, #tpu.memory_space<vmem>>, vector<15x128xf32>,
    %c0_21 = arith.constant 0 : index
    %c128_22 = arith.constant 128 : index
    %23 = vector.load %arg8[%c0_21, %c128_22] : memref<16x384xf32, #tpu.memory_space<vmem>>, vector<16x128xf32>
    tpu.vector_store %arg8[%c0_21, %c128_22], %19 {strides = array<i32>} : memref<16x384xf32, #tpu.memory_space<vmem>>, vector<16x128xf32>,
    %24 = vector.extract_strided_slice %19 {offsets = [1, 0], sizes = [15, 128], strides = [1, 1]} : vector<16x128xf32> to vector<15x128xf32>
    %c0_23 = arith.constant 0 : index
    %c256_24 = arith.constant 256 : index
    %25 = vector.load %arg8[%c0_23, %c256_24] : memref<16x384xf32, #tpu.memory_space<vmem>>, vector<15x128xf32>
    tpu.vector_store %arg8[%c0_23, %c256_24], %24 {strides = array<i32>} : memref<16x384xf32, #tpu.memory_space<vmem>>, vector<15x128xf32>,
    %c15_25 = arith.constant 15 : index
    %c256_26 = arith.constant 256 : index
    %26 = vector.load %arg8[%c15_25, %c256_26] : memref<16x384xf32, #tpu.memory_space<vmem>>, vector<1x128xf32>
    tpu.vector_store %arg8[%c15_25, %c256_26], %1 {strides = array<i32>} : memref<16x384xf32, #tpu.memory_space<vmem>>, vector<1x128xf32>,
    %c0_27 = arith.constant 0 : index
    %c0_28 = arith.constant 0 : index
    %27 = vector.load %arg8[%c0_27, %c0_28] : memref<16x384xf32, #tpu.memory_space<vmem>>, vector<16x384xf32>
    %28 = arith.truncf %27 : vector<16x384xf32> to vector<16x384xbf16>
    %c0_29 = arith.constant 0 : index
    %c0_30 = arith.constant 0 : index
    %29 = vector.load %arg4[%c0_29, %c0_30] : memref<384x128xbf16, #tpu.memory_space<vmem>>, vector<384x128xbf16>
    %cst_31 = arith.constant dense<0.000000e+00> : vector<16x128xf32>
    %30 = tpu.matmul %28, %29, %cst_31 {dimension_numbers = #tpu.dot_dimension_numbers<[1], [0], [0], [1], [0, 0, 1, 1], [], []>} : vector<16x384xbf16>, vector<384x128xbf16>, vector<16x128xf32> -> vector<16x128xf32>
    %c0_32 = arith.constant 0 : index
    %c0_33 = arith.constant 0 : index
    %31 = vector.load %arg5[%c0_32, %c0_33] : memref<1x128xf32, #tpu.memory_space<vmem>>, vector<1x128xf32>
    %32 = vector.broadcast %31 : vector<1x128xf32> to vector<16x128xf32>
    %33 = arith.addf %30, %32 : vector<16x128xf32>
    %34 = arith.addf %33, %3 : vector<16x128xf32>
    %cst_34 = arith.constant 0.000000e+00 : f32
    %35 = vector.broadcast %cst_34 : f32 to vector<16x128xf32>
    %36 = arith.maximumf %34, %35 : vector<16x128xf32>
    %c0_35 = arith.constant 0 : index
    %c0_36 = arith.constant 0 : index
    %c0_37 = arith.constant 0 : index
    %37 = vector.load %arg6[%c0_35, %c0_36, %c0_37] : memref<1x16x128xf32, #tpu.memory_space<vmem>>, vector<1x16x128xf32>
    %38 = vector.shape_cast %37 : vector<1x16x128xf32> to vector<16x128xf32>
    %39 = vector.shape_cast %36 : vector<16x128xf32> to vector<1x16x128xf32>
    tpu.vector_store %arg6[%c0_35, %c0_36, %c0_37], %39 {strides = array<i32>} : memref<1x16x128xf32, #tpu.memory_space<vmem>>, vector<1x16x128xf32>,
    return
  }
  func.func @transform_0(%arg0: i32) -> (i32, i32, i32) {
    %c0_i32 = arith.constant 0 : i32
    %c0_i32_0 = arith.constant 0 : i32
    %c0_i32_1 = arith.constant 0 : i32
    return %arg0, %c0_i32, %c0_i32_0 : i32, i32, i32
  }
  func.func @transform_1(%arg0: i32) -> (i32, i32) {
    %c0_i32 = arith.constant 0 : i32
    %c0_i32_0 = arith.constant 0 : i32
    %c0_i32_1 = arith.constant 0 : i32
    return %c0_i32, %c0_i32_0 : i32, i32
  }
  func.func @transform_2(%arg0: i32) -> (i32, i32) {
    %c0_i32 = arith.constant 0 : i32
    %c0_i32_0 = arith.constant 0 : i32
    %c0_i32_1 = arith.constant 0 : i32
    return %c0_i32, %c0_i32_0 : i32, i32
  }
  func.func @transform_3(%arg0: i32) -> (i32, i32) {
    %c0_i32 = arith.constant 0 : i32
    %c0_i32_0 = arith.constant 0 : i32
    %c0_i32_1 = arith.constant 0 : i32
    return %c0_i32, %c0_i32_0 : i32, i32
  }
  func.func @transform_4(%arg0: i32) -> (i32, i32) {
    %c0_i32 = arith.constant 0 : i32
    %c0_i32_0 = arith.constant 0 : i32
    %c0_i32_1 = arith.constant 0 : i32
    return %c0_i32, %c0_i32_0 : i32, i32
  }
  func.func @transform_5(%arg0: i32) -> (i32, i32, i32) {
    %c0_i32 = arith.constant 0 : i32
    %c0_i32_0 = arith.constant 0 : i32
    %c0_i32_1 = arith.constant 0 : i32
    return %arg0, %c0_i32, %c0_i32_0 : i32, i32, i32
  }
}

</mosaic_0001>

<llo_original>
// kernel: tpu_custom_call.1
$region0: #{tpu_custom_call.1}
  #allocation0 [shape = 'u32[]', space=smem, size = 0x4, offset = 0x4, fixed_abs, tag = 'smem constant byte address 0x4 - core index']
  #allocation1 [shape = 'u32[144,128]{1,0:T(1,128)}', space=vmem, size = 0x12000, scoped, tag = 'internal scratch']
  #allocation2 [shape = 'f32[16,384]{1,0:T(8,128)}', space=vmem, size = 0x6000, scoped, tag = 'scratch operand']
  #allocation3 [shape = 'f32[16,384]{1,0:T(8,128)}', space=vmem, size = 0x6000, scoped, tag = 'scratch operand']
  %s0 = inlined_call_operand.hbm [shape: f32[2,16,128], index: 0, kind: input, shape index: {}]
  %s1 = inlined_call_operand.hbm [shape: bf16[384,128], index: 1, kind: input, shape index: {}]
  %s2 = inlined_call_operand.vmem [shape: f32[1,128], index: 2, kind: input, shape index: {}]
  %s3 = inlined_call_operand.hbm [shape: bf16[384,128], index: 3, kind: input, shape index: {}]
  %s4 = inlined_call_operand.vmem [shape: f32[1,128], index: 4, kind: input, shape index: {}]
  %s5 = inlined_call_operand.hbm [shape: f32[2,16,128], index: 5, kind: output, shape index: {}]
  %s6 = sld [smem:[#allocation0]]
  $region65: #{tpu_custom_call.1} parent=0
    _
  %s8 = ssub.s32 1, %s6
  %s9 = scalar_select 0, %s8, %s6
  $region1: #{tpu_custom_call.1} parent=0
    #allocation4 [shape = 'u8[16384]{0}', space=vmem, size = 0x4000, scoped, tag = 'input window, operand 0']
    #allocation5 [shape = 's32[2]{0}', space=sflag, size = 0x8, scoped, tag = 'scoped memory for tpu_custom_call.1']
    #allocation6 [shape = 's32[2]{0}', space=sflag, size = 0x8, scoped, tag = 'scoped memory for tpu_custom_call.1']
    #allocation7 [shape = 'u8[98304]{0}', space=vmem, size = 0x18000, scoped, tag = 'input window, operand 1, single buffered']
    #allocation8 [shape = 's32[1]{0}', space=sflag, size = 0x4, scoped, tag = 'scoped memory for tpu_custom_call.1']
    #allocation9 [shape = 'u8[98304]{0}', space=vmem, size = 0x18000, scoped, tag = 'input window, operand 3, single buffered']
    #allocation10 [shape = 'u8[16384]{0}', space=vmem, size = 0x4000, scoped, tag = 'output window, operand 0']
    %10 = vsyncpa [#allocation5], 0
    %s11 = scalar_lea.sflag [#allocation5], 1
    %12 = vsyncpa %s11, 0
    %13 = vsyncpa [#allocation8], 0
    %14 = vsyncpa [#allocation6], 0
    %s15 = scalar_lea.sflag [#allocation6], 1
    %16 = vsyncpa %s15, 0
    loop: start=0, step=1, limit=4
    $region2: #{tpu_custom_call.1} parent=1 // loop_pre_header
      _
    $region3: #{tpu_custom_call.1} parent=1 // loop_header
      %s18 = sphi 0, %s22
      %p19 = scmp.ge.s32.totalorder %s18, 4
      %s28 = sphi 0, %s30
      %s31 = sphi 0, %s28
      %s32 = sphi 0, %s31
      %s48 = sphi 0, %s32
      %s52 = sphi 0, %s52
      %s54 = sphi 0, %s52
      %s55 = sphi 0, %s54
      %s69 = sphi 0, %s55
      %s73 = sphi 0, %s73
      %s75 = sphi 0, %s73
      %s76 = sphi 0, %s75
      %s90 = sphi 0, %s76
      %s94 = sphi 0, %s94
      %s96 = sphi 0, %s94
      %s97 = sphi 0, %s96
      %s111 = sphi 0, %s97
      %s115 = sphi 0, %s115
      %s117 = sphi 0, %s115
      %s118 = sphi 0, %s117
      %s132 = sphi 0, %s118
      %s138 = sphi 0, %s140
      %s141 = sphi 0, %s138
      %s142 = sphi 0, %s141
      %s158 = sphi 0, %s142
    $region4: #{tpu_custom_call.1} parent=1 // loop_header_branch
      %21 = sbr.rel (%p19) target = $region8
    $region5: #{tpu_custom_call.1} parent=1 // loop_body
      %s23 = ssub.s32 %s18, 1
      %s24 = ssub.s32 %s18, 2
      %s25 = sadd.s32 %s18, 1
      %s26 = ssub.s32 %s18, %s25
      %p27 = scmp.eq.s32.totalorder %s26, 0
      %s29 = sadd.s32 %s28, 1
      %s30 = scalar_select %p27, %s28, %s29
      %p33 = pneg %p27
      %p34 = scmp.eq.s32.totalorder %s18, 1
      %p35 = por %p33, %p34
      %p36 = scmp.ne.s32.totalorder %s28, %s31
      %p37 = scmp.eq.s32.totalorder %s18, 0
      %p38 = por %p36, %p37
      %p39 = scmp.ne.s32.totalorder %s28, %s31
      %p40 = scmp.eq.s32.totalorder %s23, 1
      %p41 = por %p39, %p40
      %p42 = scmp.ne.s32.totalorder %s31, %s32
      %p43 = scmp.eq.s32.totalorder %s23, 0
      %p44 = por %p42, %p43
      %p45 = scmp.ne.s32.totalorder %s31, %s32
      %p46 = scmp.eq.s32.totalorder %s24, 1
      %p47 = por %p45, %p46
      %p49 = scmp.ne.s32.totalorder %s32, %s48
      %p50 = scmp.eq.s32.totalorder %s24, 0
      %p51 = por %p49, %p50
      %s53 = sadd.s32 %s52, 1
      %p56 = scmp.eq.s32.totalorder %s18, 1
      %p57 = scmp.ne.s32.totalorder %s52, %s54
      %p58 = scmp.eq.s32.totalorder %s18, 0
      %p59 = por %p57, %p58
      %p60 = scmp.ne.s32.totalorder %s52, %s54
      %p61 = scmp.eq.s32.totalorder %s23, 1
      %p62 = por %p60, %p61
      %p63 = scmp.ne.s32.totalorder %s54, %s55
      %p64 = scmp.eq.s32.totalorder %s23, 0
      %p65 = por %p63, %p64
      %p66 = scmp.ne.s32.totalorder %s54, %s55
      %p67 = scmp.eq.s32.totalorder %s24, 1
      %p68 = por %p66, %p67
      %p70 = scmp.ne.s32.totalorder %s55, %s69
      %p71 = scmp.eq.s32.totalorder %s24, 0
      %p72 = por %p70, %p71
      %s74 = sadd.s32 %s73, 1
      %p77 = scmp.eq.s32.totalorder %s18, 1
      %p78 = scmp.ne.s32.totalorder %s73, %s75
      %p79 = scmp.eq.s32.totalorder %s18, 0
      %p80 = por %p78, %p79
      %p81 = scmp.ne.s32.totalorder %s73, %s75
      %p82 = scmp.eq.s32.totalorder %s23, 1
      %p83 = por %p81, %p82
      %p84 = scmp.ne.s32.totalorder %s75, %s76
      %p85 = scmp.eq.s32.totalorder %s23, 0
      %p86 = por %p84, %p85
      %p87 = scmp.ne.s32.totalorder %s75, %s76
      %p88 = scmp.eq.s32.totalorder %s24, 1
      %p89 = por %p87, %p88
      %p91 = scmp.ne.s32.totalorder %s76, %s90
      %p92 = scmp.eq.s32.totalorder %s24, 0
      %p93 = por %p91, %p92
      %s95 = sadd.s32 %s94, 1
      %p98 = scmp.eq.s32.totalorder %s18, 1
      %p99 = scmp.ne.s32.totalorder %s94, %s96
      %p100 = scmp.eq.s32.totalorder %s18, 0
      %p101 = por %p99, %p100
      %p102 = scmp.ne.s32.totalorder %s94, %s96
      %p103 = scmp.eq.s32.totalorder %s23, 1
      %p104 = por %p102, %p103
      %p105 = scmp.ne.s32.totalorder %s96, %s97
      %p106 = scmp.eq.s32.totalorder %s23, 0
      %p107 = por %p105, %p106
      %p108 = scmp.ne.s32.totalorder %s96, %s97
      %p109 = scmp.eq.s32.totalorder %s24, 1
      %p110 = por %p108, %p109
      %p112 = scmp.ne.s32.totalorder %s97, %s111
      %p113 = scmp.eq.s32.totalorder %s24, 0
      %p114 = por %p112, %p113
      %s116 = sadd.s32 %s115, 1
      %p119 = scmp.eq.s32.totalorder %s18, 1
      %p120 = scmp.ne.s32.totalorder %s115, %s117
      %p121 = scmp.eq.s32.totalorder %s18, 0
      %p122 = por %p120, %p121
      %p123 = scmp.ne.s32.totalorder %s115, %s117
      %p124 = scmp.eq.s32.totalorder %s23, 1
      %p125 = por %p123, %p124
      %p126 = scmp.ne.s32.totalorder %s117, %s118
      %p127 = scmp.eq.s32.totalorder %s23, 0
      %p128 = por %p126, %p127
      %p129 = scmp.ne.s32.totalorder %s117, %s118
      %p130 = scmp.eq.s32.totalorder %s24, 1
      %p131 = por %p129, %p130
      %p133 = scmp.ne.s32.totalorder %s118, %s132
      %p134 = scmp.eq.s32.totalorder %s24, 0
      %p135 = por %p133, %p134
      %s136 = ssub.s32 %s18, %s25
      %p137 = scmp.eq.s32.totalorder %s136, 0
      %s139 = sadd.s32 %s138, 1
      %s140 = scalar_select %p137, %s138, %s139
      %p143 = pneg %p137
      %p144 = scmp.eq.s32.totalorder %s18, 1
      %p145 = por %p143, %p144
      %p146 = scmp.ne.s32.totalorder %s138, %s141
      %p147 = scmp.eq.s32.totalorder %s18, 0
      %p148 = por %p146, %p147
      %p149 = scmp.ne.s32.totalorder %s138, %s141
      %p150 = scmp.eq.s32.totalorder %s23, 1
      %p151 = por %p149, %p150
      %p152 = scmp.ne.s32.totalorder %s141, %s142
      %p153 = scmp.eq.s32.totalorder %s23, 0
      %p154 = por %p152, %p153
      %p155 = scmp.ne.s32.totalorder %s141, %s142
      %p156 = scmp.eq.s32.totalorder %s24, 1
      %p157 = por %p155, %p156
      %p159 = scmp.ne.s32.totalorder %s142, %s158
      %p160 = scmp.eq.s32.totalorder %s24, 0
      %p161 = por %p159, %p160
      %p162 = scmp.le.s32.totalorder 1, %s18
      %p163 = scmp.lt.s32.totalorder %s18, 3
      %p164 = pnand %p162, %p163
      %p165 = pneg %p164
      // Predicated region
      $region9: #{tpu_custom_call.1} parent=5 // pred_check
        _
      $region10: #{tpu_custom_call.1} parent=5 // pred_check_branch
        %167 = sbr.rel (%p164) target = $region12
      $region11: #{tpu_custom_call.1} parent=5 // pred_region
        %s168 = ssub.s32 %s18, 1
        // Predicated region
        $region13: #{tpu_custom_call.1} parent=11 // pred_check
          %p169 = pneg %p65
        $region14: #{tpu_custom_call.1} parent=11 // pred_check_branch
          %171 = sbr.rel (%p169) target = $region16
        $region15: #{tpu_custom_call.1} parent=11 // pred_region
          %s173 = ssub.s32 3072, 3072
          %174 = vsyncadd [#allocation8], %s173
          %s175 = sshll.u32 [#allocation7], 4
          %s176 = int_to_ptr.vmem [resolvable:$true] %s175
          %181 = dma.hbm_to_vmem [thread:$0]  %s1, 3072, %s176, [#allocation8], 64, 64, 4
        $region16: #{tpu_custom_call.1} parent=11 // pred_fallthru
          _
        // Predicated region
        $region17: #{tpu_custom_call.1} parent=11 // pred_check
          %p182 = pneg %p86
        $region18: #{tpu_custom_call.1} parent=11 // pred_check_branch
          %184 = sbr.rel (%p182) target = $region20
        $region19: #{tpu_custom_call.1} parent=11 // pred_region
          _
        $region20: #{tpu_custom_call.1} parent=11 // pred_fallthru
          _
        // Predicated region
        $region21: #{tpu_custom_call.1} parent=11 // pred_check
          %p185 = pneg %p107
        $region22: #{tpu_custom_call.1} parent=11 // pred_check_branch
          %187 = sbr.rel (%p185) target = $region24
        $region23: #{tpu_custom_call.1} parent=11 // pred_region
          %s189 = ssub.s32 3072, 3072
          %190 = vsyncadd [#allocation8], %s189
          %s191 = sshll.u32 [#allocation9], 4
          %s192 = int_to_ptr.vmem [resolvable:$true] %s191
          %197 = dma.hbm_to_vmem [thread:$0]  %s3, 3072, %s192, [#allocation8], 64, 64, 4
        $region24: #{tpu_custom_call.1} parent=11 // pred_fallthru
          _
        // Predicated region
        $region25: #{tpu_custom_call.1} parent=11 // pred_check
          %p198 = pneg %p128
        $region26: #{tpu_custom_call.1} parent=11 // pred_check_branch
          %200 = sbr.rel (%p198) target = $region28
        $region27: #{tpu_custom_call.1} parent=11 // pred_region
          _
        $region28: #{tpu_custom_call.1} parent=11 // pred_fallthru
          _
      $region12: #{tpu_custom_call.1} parent=5 // pred_fallthru
        _
      %p201 = scmp.lt.s32.totalorder %s18, 2
      // Predicated region
      $region29: #{tpu_custom_call.1} parent=5 // pred_check
        %p202 = pneg %p201
      $region30: #{tpu_custom_call.1} parent=5 // pred_check_branch
        %204 = sbr.rel (%p202) target = $region32
      $region31: #{tpu_custom_call.1} parent=5 // pred_region
        // Predicated region
        $region33: #{tpu_custom_call.1} parent=31 // pred_check
          %p205 = pneg %p38
        $region34: #{tpu_custom_call.1} parent=31 // pred_check_branch
          %207 = sbr.rel (%p205) target = $region36
        $region35: #{tpu_custom_call.1} parent=31 // pred_region
          %s208 = sand.u32 %s28, 1
          %s209 = scalar_lea.sflag [#allocation5], %s208
          %s210 = sand.u32 %s28, 1
          %s211 = smul.addr %s210, 16
          %s212 = scalar_lea.vmem [#allocation4], %s211
          %s214 = ssub.s32 256, 256
          %215 = vsyncadd %s209, %s214
          %s216 = smul.addr %s18, 2
          %s217 = smul.addr %s216, 128
          %s218 = scalar_lea.hbm %s0, %s217
          %s219 = sshll.u32 %s212, 4
          %s220 = int_to_ptr.vmem [resolvable:$true] %s219
          %225 = dma.hbm_to_vmem [thread:$0]  %s218, 256, %s220, %s209, 128, 128, 8
        $region36: #{tpu_custom_call.1} parent=31 // pred_fallthru
          _
      $region32: #{tpu_custom_call.1} parent=5 // pred_fallthru
        _
      %p226 = scmp.le.s32.totalorder 1, %s18
      %p227 = scmp.lt.s32.totalorder %s18, 3
      %p228 = pnand %p226, %p227
      %p229 = pneg %p228
      // Predicated region
      $region37: #{tpu_custom_call.1} parent=5 // pred_check
        _
      $region38: #{tpu_custom_call.1} parent=5 // pred_check_branch
        %231 = sbr.rel (%p228) target = $region40
      $region39: #{tpu_custom_call.1} parent=5 // pred_region
        %s232 = ssub.s32 %s18, 1
        %s233 = sand.u32 %s31, 1
        %s234 = scalar_lea.sflag [#allocation5], %s233
        %s235 = sand.u32 %s31, 1
        %s236 = smul.addr %s235, 16
        %s237 = scalar_lea.vmem [#allocation4], %s236
        // Predicated region
        $region41: #{tpu_custom_call.1} parent=39 // pred_check
          %p238 = pneg %p44
        $region42: #{tpu_custom_call.1} parent=39 // pred_check_branch
          %240 = sbr.rel (%p238) target = $region44
        $region43: #{tpu_custom_call.1} parent=39 // pred_region
          %241 = dma.done %s234, 256
        $region44: #{tpu_custom_call.1} parent=39 // pred_fallthru
          _
        // Predicated region
        $region45: #{tpu_custom_call.1} parent=39 // pred_check
          %p242 = pneg %p65
        $region46: #{tpu_custom_call.1} parent=39 // pred_check_branch
          %244 = sbr.rel (%p242) target = $region48
        $region47: #{tpu_custom_call.1} parent=39 // pred_region
          %245 = dma.done [#allocation8], 3072
        $region48: #{tpu_custom_call.1} parent=39 // pred_fallthru
          _
        // Predicated region
        $region49: #{tpu_custom_call.1} parent=39 // pred_check
          %p246 = pneg %p107
        $region50: #{tpu_custom_call.1} parent=39 // pred_check_branch
          %248 = sbr.rel (%p246) target = $region52
        $region51: #{tpu_custom_call.1} parent=39 // pred_region
          %249 = dma.done [#allocation8], 3072
        $region52: #{tpu_custom_call.1} parent=39 // pred_fallthru
          _
        %s250 = sand.u32 %s31, 1
        %s251 = scalar_lea.sflag [#allocation5], %s250
        %s252 = sand.u32 %s31, 1
        %s253 = smul.addr %s252, 16
        %s254 = scalar_lea.vmem [#allocation4], %s253
        %p255 = pneg %p44
        %p256 = pneg %p41
        %p257 = pneg %p65
        %p258 = pneg %p62
        %p259 = pneg %p86
        %p260 = pneg %p83
        %p261 = pneg %p107
        %p262 = pneg %p104
        %p263 = pneg %p128
        %p264 = pneg %p125
        %p265 = pneg %p154
        %p266 = pneg %p151
        %s267 = sand.u32 %s141, 1
        %s268 = scalar_lea.sflag [#allocation6], %s267
        %s269 = sand.u32 %s141, 1
        %s270 = smul.addr %s269, 16
        %s271 = scalar_lea.vmem [#allocation10], %s270
        %v273 = vld [vmem:[%s237] sm:$0xff]
        %v274 = vld [vmem:[%s237 + $0x8] sm:$0xff]
        %275 = vst [vmem:[#allocation2] sm:$0x1] 0.0
        %vm278 = vcmask 1040384
        %v279 = vrot.slane %v273, 7
        %v280 = vrot.slane %v274, 7
        %v281 = vsel %vm278, %v279, %v280
        %284 = vst [vmem:[#allocation2] sm:$0xfe] %v279
        %285 = vst [vmem:[#allocation2 + $0x18] sm:$0xff] %v281
        %286 = vst [vmem:[#allocation2 + $0x8] sm:$0xff] %v273
        %287 = vst [vmem:[#allocation2 + $0x20] sm:$0xff] %v274
        %vm288 = vcmask 1046528
        %v289 = vrot.slane %v273, 1
        %v290 = vrot.slane %v274, 1
        %v291 = vsel %vm288, %v289, %v290
        %294 = vst [vmem:[#allocation2 + $0x10] sm:$0xff] %v291
        %295 = vst [vmem:[#allocation2 + $0x28] sm:$0x7f] %v290
        %296 = vst [vmem:[#allocation2 + $0x2f] sm:$0x1] 0.0
        %v297 = vld [vmem:[#allocation2] sm:$0xff]
        %v298 = vld [vmem:[#allocation2 + $0x8] sm:$0xff]
        %v299 = vld [vmem:[#allocation2 + $0x10] sm:$0xff]
        %v300 = vld [vmem:[#allocation2 + $0x18] sm:$0xff]
        %v301 = vld [vmem:[#allocation2 + $0x20] sm:$0xff]
        %v302 = vld [vmem:[#allocation2 + $0x28] sm:$0xff]
        %v303 = vpack.c.bf16 %v300, %v297
        %v304 = vpack.c.bf16 %v301, %v298
        %v305 = vpack.c.bf16 %v302, %v299
        %v306 = vld [vmem:[#allocation7] sm:$0xf]
        %v307 = vld [vmem:[#allocation7 + $0x4] sm:$0xf]
        %v308 = vld [vmem:[#allocation7 + $0x8] sm:$0xf]
        %v309 = vld [vmem:[#allocation7 + $0xc] sm:$0xf]
        %v310 = vld [vmem:[#allocation7 + $0x10] sm:$0xf]
        %v311 = vld [vmem:[#allocation7 + $0x14] sm:$0xf]
        %v312 = vld [vmem:[#allocation7 + $0x18] sm:$0xf]
        %v313 = vld [vmem:[#allocation7 + $0x1c] sm:$0xf]
        %v314 = vld [vmem:[#allocation7 + $0x20] sm:$0xf]
        %v315 = vld [vmem:[#allocation7 + $0x24] sm:$0xf]
        %v316 = vld [vmem:[#allocation7 + $0x28] sm:$0xf]
        %v317 = vld [vmem:[#allocation7 + $0x2c] sm:$0xf]
        %v318 = vld [vmem:[#allocation7 + $0x30] sm:$0xf]
        %v319 = vld [vmem:[#allocation7 + $0x34] sm:$0xf]
        %v320 = vld [vmem:[#allocation7 + $0x38] sm:$0xf]
        %v321 = vld [vmem:[#allocation7 + $0x3c] sm:$0xf]
        %v322 = vld [vmem:[#allocation7 + $0x40] sm:$0xf]
        %v323 = vld [vmem:[#allocation7 + $0x44] sm:$0xf]
        %v324 = vld [vmem:[#allocation7 + $0x48] sm:$0xf]
        %v325 = vld [vmem:[#allocation7 + $0x4c] sm:$0xf]
        %v326 = vld [vmem:[#allocation7 + $0x50] sm:$0xf]
        %v327 = vld [vmem:[#allocation7 + $0x54] sm:$0xf]
        %v328 = vld [vmem:[#allocation7 + $0x58] sm:$0xf]
        %v329 = vld [vmem:[#allocation7 + $0x5c] sm:$0xf]
        %v330 = vld [vmem:[#allocation7 + $0x60] sm:$0xf]
        %v331 = vld [vmem:[#allocation7 + $0x64] sm:$0xf]
        %v332 = vld [vmem:[#allocation7 + $0x68] sm:$0xf]
        %v333 = vld [vmem:[#allocation7 + $0x6c] sm:$0xf]
        %v334 = vld [vmem:[#allocation7 + $0x70] sm:$0xf]
        %v335 = vld [vmem:[#allocation7 + $0x74] sm:$0xf]
        %v336 = vld [vmem:[#allocation7 + $0x78] sm:$0xf]
        %v337 = vld [vmem:[#allocation7 + $0x7c] sm:$0xf]
        %v338 = vld [vmem:[#allocation7 + $0x80] sm:$0xf]
        %v339 = vld [vmem:[#allocation7 + $0x84] sm:$0xf]
        %v340 = vld [vmem:[#allocation7 + $0x88] sm:$0xf]
        %v341 = vld [vmem:[#allocation7 + $0x8c] sm:$0xf]
        %v342 = vld [vmem:[#allocation7 + $0x90] sm:$0xf]
        %v343 = vld [vmem:[#allocation7 + $0x94] sm:$0xf]
        %v344 = vld [vmem:[#allocation7 + $0x98] sm:$0xf]
        %v345 = vld [vmem:[#allocation7 + $0x9c] sm:$0xf]
        %v346 = vld [vmem:[#allocation7 + $0xa0] sm:$0xf]
        %v347 = vld [vmem:[#allocation7 + $0xa4] sm:$0xf]
        %v348 = vld [vmem:[#allocation7 + $0xa8] sm:$0xf]
        %v349 = vld [vmem:[#allocation7 + $0xac] sm:$0xf]
        %v350 = vld [vmem:[#allocation7 + $0xb0] sm:$0xf]
        %v351 = vld [vmem:[#allocation7 + $0xb4] sm:$0xf]
        %v352 = vld [vmem:[#allocation7 + $0xb8] sm:$0xf]
        %v353 = vld [vmem:[#allocation7 + $0xbc] sm:$0xf]
        %v354 = vld [vmem:[%s2] sm:$0x1]
        %v356 = vlaneseq
        %v357 = vshrl.u32 %v356, 7
        %v358 = vsub.s32 0, %v357
        %v359 = vrot.slane %v354, %v358
        %v409 = vunpack.c.l.b16 %v306
        %v410 = vunpack.c.l.b16 %v307
        %v411 = vunpack.c.l.b16 %v308
        %v412 = vunpack.c.l.b16 %v309
        %v413 = vunpack.c.l.b16 %v310
        %v414 = vunpack.c.l.b16 %v311
        %v415 = vunpack.c.l.b16 %v312
        %v416 = vunpack.c.l.b16 %v313
        %v417 = vunpack.c.l.b16 %v314
        %v418 = vunpack.c.l.b16 %v315
        %v419 = vunpack.c.l.b16 %v316
        %v420 = vunpack.c.l.b16 %v317
        %v421 = vunpack.c.l.b16 %v318
        %v422 = vunpack.c.l.b16 %v319
        %v423 = vunpack.c.l.b16 %v320
        %v424 = vunpack.c.l.b16 %v321
        %v425 = vunpack.c.l.b16 %v322
        %v426 = vunpack.c.l.b16 %v323
        %v427 = vunpack.c.l.b16 %v324
        %v428 = vunpack.c.l.b16 %v325
        %v429 = vunpack.c.l.b16 %v326
        %v430 = vunpack.c.l.b16 %v327
        %v431 = vunpack.c.l.b16 %v328
        %v432 = vunpack.c.l.b16 %v329
        %v433 = vunpack.c.l.b16 %v330
        %v434 = vunpack.c.l.b16 %v331
        %v435 = vunpack.c.l.b16 %v332
        %v436 = vunpack.c.l.b16 %v333
        %v437 = vunpack.c.l.b16 %v334
        %v438 = vunpack.c.l.b16 %v335
        %v439 = vunpack.c.l.b16 %v336
        %v440 = vunpack.c.l.b16 %v337
        %v441 = vunpack.c.l.b16 %v338
        %v442 = vunpack.c.l.b16 %v339
        %v443 = vunpack.c.l.b16 %v340
        %v444 = vunpack.c.l.b16 %v341
        %v445 = vunpack.c.l.b16 %v342
        %v446 = vunpack.c.l.b16 %v343
        %v447 = vunpack.c.l.b16 %v344
        %v448 = vunpack.c.l.b16 %v345
        %v449 = vunpack.c.l.b16 %v346
        %v450 = vunpack.c.l.b16 %v347
        %v451 = vunpack.c.l.b16 %v348
        %v452 = vunpack.c.l.b16 %v349
        %v453 = vunpack.c.l.b16 %v350
        %v454 = vunpack.c.l.b16 %v351
        %v455 = vunpack.c.l.b16 %v352
        %v456 = vunpack.c.l.b16 %v353
        %v457 = vpack.c.b16 %v410, %v409
        %v458 = vpack.c.b16 %v412, %v411
        %v459 = vpack.c.b16 %v414, %v413
        %v460 = vpack.c.b16 %v416, %v415
        %v461 = vpack.c.b16 %v418, %v417
        %v462 = vpack.c.b16 %v420, %v419
        %v463 = vpack.c.b16 %v422, %v421
        %v464 = vpack.c.b16 %v424, %v423
        %v465 = vpack.c.b16 %v426, %v425
        %v466 = vpack.c.b16 %v428, %v427
        %v467 = vpack.c.b16 %v430, %v429
        %v468 = vpack.c.b16 %v432, %v431
        %v469 = vpack.c.b16 %v434, %v433
        %v470 = vpack.c.b16 %v436, %v435
        %v471 = vpack.c.b16 %v438, %v437
        %v472 = vpack.c.b16 %v440, %v439
        %v473 = vpack.c.b16 %v442, %v441
        %v474 = vpack.c.b16 %v444, %v443
        %v475 = vpack.c.b16 %v446, %v445
        %v476 = vpack.c.b16 %v448, %v447
        %v477 = vpack.c.b16 %v450, %v449
        %v478 = vpack.c.b16 %v452, %v451
        %v479 = vpack.c.b16 %v454, %v453
        %v480 = vpack.c.b16 %v456, %v455
        %505 = vmatprep.subr.bf16.mxu0 0
        %506 = vmatpush1.bf16.msra.mxu0 %v457
        %507 = vmatprep.subr.bf16.mxu0 0
        %508 = vmatpush1.bf16.msra.mxu0 %v458
        %509 = vmatprep.subr.bf16.mxu0 0
        %510 = vmatpush1.bf16.msra.mxu0 %v459
        %511 = vmatprep.subr.bf16.mxu0 0
        %512 = vmatpush1.bf16.msra.mxu0 %v460
        %513 = vmatprep.subr.bf16.mxu0 0
        %514 = vmatpush1.bf16.msra.mxu0 %v461
        %515 = vmatprep.subr.bf16.mxu0 0
        %516 = vmatpush1.bf16.msra.mxu0 %v462
        %517 = vmatprep.subr.bf16.mxu0 0
        %518 = vmatpush1.bf16.msra.mxu0 %v463
        %519 = vmatprep.subr.bf16.mxu0 0
        %520 = vmatpush1.bf16.msra.mxu0 %v464
        %521 = vmatprep.subr.bf16.mxu0 0
        %522 = vmatpush1.bf16.msra.mxu0 %v465
        %523 = vmatprep.subr.bf16.mxu0 0
        %524 = vmatpush1.bf16.msra.mxu0 %v466
        %525 = vmatprep.subr.bf16.mxu0 0
        %526 = vmatpush1.bf16.msra.mxu0 %v467
        %527 = vmatprep.subr.bf16.mxu0 0
        %528 = vmatpush1.bf16.msra.mxu0 %v468
        %529 = vmatprep.subr.bf16.mxu0 0
        %530 = vmatpush1.bf16.msra.mxu0 %v469
        %531 = vmatprep.subr.bf16.mxu0 0
        %532 = vmatpush1.bf16.msra.mxu0 %v470
        %533 = vmatprep.subr.bf16.mxu0 0
        %534 = vmatpush1.bf16.msra.mxu0 %v471
        %535 = vmatprep.subr.bf16.mxu0 0
        %536 = vmatpush1.bf16.msra.mxu0 %v472
        %537 = vmatprep.mubr.bf16.mxu0 %v304
        %538 = vmatmul.mubr.bf16.gmra.mrb[0].mxu0 %v303
        %v539 = vpop.f32.mrb[0].mxu0
        %v540 = vadd.f32 %v359, %v539
        %v541 = vpop.f32.mrb[0].mxu0
        %v542 = vpop.f32.mrb[0].mxu0
        %v543 = vadd.f32 %v359, %v542
        %v544 = vpop.f32.mrb[0].mxu0
        %545 = vdwg.mxu0
        %546 = vmatprep.subr.bf16.mxu0 0
        %547 = vmatpush1.bf16.msra.mxu0 %v473
        %548 = vmatprep.subr.bf16.mxu0 0
        %549 = vmatpush1.bf16.msra.mxu0 %v474
        %550 = vmatprep.subr.bf16.mxu0 0
        %551 = vmatpush1.bf16.msra.mxu0 %v475
        %552 = vmatprep.subr.bf16.mxu0 0
        %553 = vmatpush1.bf16.msra.mxu0 %v476
        %554 = vmatprep.subr.bf16.mxu0 0
        %555 = vmatpush1.bf16.msra.mxu0 %v477
        %556 = vmatprep.subr.bf16.mxu0 0
        %557 = vmatpush1.bf16.msra.mxu0 %v478
        %558 = vmatprep.subr.bf16.mxu0 0
        %559 = vmatpush1.bf16.msra.mxu0 %v479
        %560 = vmatprep.subr.bf16.mxu0 0
        %561 = vmatpush1.bf16.msra.mxu0 %v480
        %562 = vmatprep.subr.bf16.mxu0 0
        %563 = vmatpush1.bf16.msra.mxu0 0
        %564 = vmatprep.subr.bf16.mxu0 0
        %565 = vmatpush1.bf16.msra.mxu0 0
        %566 = vmatprep.subr.bf16.mxu0 0
        %567 = vmatpush1.bf16.msra.mxu0 0
        %568 = vmatprep.subr.bf16.mxu0 0
        %569 = vmatpush1.bf16.msra.mxu0 0
        %570 = vmatprep.subr.bf16.mxu0 0
        %571 = vmatpush1.bf16.msra.mxu0 0
        %572 = vmatprep.subr.bf16.mxu0 0
        %573 = vmatpush1.bf16.msra.mxu0 0
        %574 = vmatprep.subr.bf16.mxu0 0
        %575 = vmatpush1.bf16.msra.mxu0 0
        %576 = vmatprep.subr.bf16.mxu0 0
        %577 = vmatpush1.bf16.msra.mxu0 0
        %578 = vmatprep.mubr.bf16.mxu0 0
        %579 = vmatmul.mubr.bf16.gmra.mrb[0].mxu0 %v305
        %v580 = vpop.f32.mrb[0].mxu0
        %v581 = vadd.f32 %v540, %v580
        %v582 = vpop.f32.mrb[0].mxu0
        %v583 = vpop.f32.mrb[0].mxu0
        %v584 = vadd.f32 %v543, %v583
        %v585 = vpop.f32.mrb[0].mxu0
        %586 = vdwg.mxu0
        %v587 = vmax.f32 %v581, 0.0
        %v588 = vmax.f32 %v584, 0.0
        %589 = vst [vmem:[#allocation3] sm:$0x1] 0.0
        %v592 = vrot.slane %v587, 7
        %v593 = vrot.slane %v588, 7
        %v594 = vsel %vm278, %v592, %v593
        %597 = vst [vmem:[#allocation3] sm:$0xfe] %v592
        %598 = vst [vmem:[#allocation3 + $0x18] sm:$0xff] %v594
        %599 = vst [vmem:[#allocation3 + $0x8] sm:$0xff] %v587
        %600 = vst [vmem:[#allocation3 + $0x20] sm:$0xff] %v588
        %v601 = vrot.slane %v587, 1
        %v602 = vrot.slane %v588, 1
        %v603 = vsel %vm288, %v601, %v602
        %606 = vst [vmem:[#allocation3 + $0x10] sm:$0xff] %v603
        %607 = vst [vmem:[#allocation3 + $0x28] sm:$0x7f] %v602
        %608 = vst [vmem:[#allocation3 + $0x2f] sm:$0x1] 0.0
        %v609 = vld [vmem:[#allocation3] sm:$0xff]
        %v610 = vld [vmem:[#allocation3 + $0x8] sm:$0xff]
        %v611 = vld [vmem:[#allocation3 + $0x10] sm:$0xff]
        %v612 = vld [vmem:[#allocation3 + $0x18] sm:$0xff]
        %v613 = vld [vmem:[#allocation3 + $0x20] sm:$0xff]
        %v614 = vld [vmem:[#allocation3 + $0x28] sm:$0xff]
        %v615 = vpack.c.bf16 %v612, %v609
        %v616 = vpack.c.bf16 %v613, %v610
        %v617 = vpack.c.bf16 %v614, %v611
        %v618 = vld [vmem:[#allocation9] sm:$0xf]
        %v619 = vld [vmem:[#allocation9 + $0x4] sm:$0xf]
        %v620 = vld [vmem:[#allocation9 + $0x8] sm:$0xf]
        %v621 = vld [vmem:[#allocation9 + $0xc] sm:$0xf]
        %v622 = vld [vmem:[#allocation9 + $0x10] sm:$0xf]
        %v623 = vld [vmem:[#allocation9 + $0x14] sm:$0xf]
        %v624 = vld [vmem:[#allocation9 + $0x18] sm:$0xf]
        %v625 = vld [vmem:[#allocation9 + $0x1c] sm:$0xf]
        %v626 = vld [vmem:[#allocation9 + $0x20] sm:$0xf]
        %v627 = vld [vmem:[#allocation9 + $0x24] sm:$0xf]
        %v628 = vld [vmem:[#allocation9 + $0x28] sm:$0xf]
        %v629 = vld [vmem:[#allocation9 + $0x2c] sm:$0xf]
        %v630 = vld [vmem:[#allocation9 + $0x30] sm:$0xf]
        %v631 = vld [vmem:[#allocation9 + $0x34] sm:$0xf]
        %v632 = vld [vmem:[#allocation9 + $0x38] sm:$0xf]
        %v633 = vld [vmem:[#allocation9 + $0x3c] sm:$0xf]
        %v634 = vld [vmem:[#allocation9 + $0x40] sm:$0xf]
        %v635 = vld [vmem:[#allocation9 + $0x44] sm:$0xf]
        %v636 = vld [vmem:[#allocation9 + $0x48] sm:$0xf]
        %v637 = vld [vmem:[#allocation9 + $0x4c] sm:$0xf]
        %v638 = vld [vmem:[#allocation9 + $0x50] sm:$0xf]
        %v639 = vld [vmem:[#allocation9 + $0x54] sm:$0xf]
        %v640 = vld [vmem:[#allocation9 + $0x58] sm:$0xf]
        %v641 = vld [vmem:[#allocation9 + $0x5c] sm:$0xf]
        %v642 = vld [vmem:[#allocation9 + $0x60] sm:$0xf]
        %v643 = vld [vmem:[#allocation9 + $0x64] sm:$0xf]
        %v644 = vld [vmem:[#allocation9 + $0x68] sm:$0xf]
        %v645 = vld [vmem:[#allocation9 + $0x6c] sm:$0xf]
        %v646 = vld [vmem:[#allocation9 + $0x70] sm:$0xf]
        %v647 = vld [vmem:[#allocation9 + $0x74] sm:$0xf]
        %v648 = vld [vmem:[#allocation9 + $0x78] sm:$0xf]
        %v649 = vld [vmem:[#allocation9 + $0x7c] sm:$0xf]
        %v650 = vld [vmem:[#allocation9 + $0x80] sm:$0xf]
        %v651 = vld [vmem:[#allocation9 + $0x84] sm:$0xf]
        %v652 = vld [vmem:[#allocation9 + $0x88] sm:$0xf]
        %v653 = vld [vmem:[#allocation9 + $0x8c] sm:$0xf]
        %v654 = vld [vmem:[#allocation9 + $0x90] sm:$0xf]
        %v655 = vld [vmem:[#allocation9 + $0x94] sm:$0xf]
        %v656 = vld [vmem:[#allocation9 + $0x98] sm:$0xf]
        %v657 = vld [vmem:[#allocation9 + $0x9c] sm:$0xf]
        %v658 = vld [vmem:[#allocation9 + $0xa0] sm:$0xf]
        %v659 = vld [vmem:[#allocation9 + $0xa4] sm:$0xf]
        %v660 = vld [vmem:[#allocation9 + $0xa8] sm:$0xf]
        %v661 = vld [vmem:[#allocation9 + $0xac] sm:$0xf]
        %v662 = vld [vmem:[#allocation9 + $0xb0] sm:$0xf]
        %v663 = vld [vmem:[#allocation9 + $0xb4] sm:$0xf]
        %v664 = vld [vmem:[#allocation9 + $0xb8] sm:$0xf]
        %v665 = vld [vmem:[#allocation9 + $0xbc] sm:$0xf]
        %v666 = vld [vmem:[%s4] sm:$0x1]
        %v668 = vlaneseq
        %v669 = vshrl.u32 %v668, 7
        %v670 = vsub.s32 0, %v669
        %v671 = vrot.slane %v666, %v670
        %v721 = vunpack.c.l.b16 %v618
        %v722 = vunpack.c.l.b16 %v619
        %v723 = vunpack.c.l.b16 %v620
        %v724 = vunpack.c.l.b16 %v621
        %v725 = vunpack.c.l.b16 %v622
        %v726 = vunpack.c.l.b16 %v623
        %v727 = vunpack.c.l.b16 %v624
        %v728 = vunpack.c.l.b16 %v625
        %v729 = vunpack.c.l.b16 %v626
        %v730 = vunpack.c.l.b16 %v627
        %v731 = vunpack.c.l.b16 %v628
        %v732 = vunpack.c.l.b16 %v629
        %v733 = vunpack.c.l.b16 %v630
        %v734 = vunpack.c.l.b16 %v631
        %v735 = vunpack.c.l.b16 %v632
        %v736 = vunpack.c.l.b16 %v633
        %v737 = vunpack.c.l.b16 %v634
        %v738 = vunpack.c.l.b16 %v635
        %v739 = vunpack.c.l.b16 %v636
        %v740 = vunpack.c.l.b16 %v637
        %v741 = vunpack.c.l.b16 %v638
        %v742 = vunpack.c.l.b16 %v639
        %v743 = vunpack.c.l.b16 %v640
        %v744 = vunpack.c.l.b16 %v641
        %v745 = vunpack.c.l.b16 %v642
        %v746 = vunpack.c.l.b16 %v643
        %v747 = vunpack.c.l.b16 %v644
        %v748 = vunpack.c.l.b16 %v645
        %v749 = vunpack.c.l.b16 %v646
        %v750 = vunpack.c.l.b16 %v647
        %v751 = vunpack.c.l.b16 %v648
        %v752 = vunpack.c.l.b16 %v649
        %v753 = vunpack.c.l.b16 %v650
        %v754 = vunpack.c.l.b16 %v651
        %v755 = vunpack.c.l.b16 %v652
        %v756 = vunpack.c.l.b16 %v653
        %v757 = vunpack.c.l.b16 %v654
        %v758 = vunpack.c.l.b16 %v655
        %v759 = vunpack.c.l.b16 %v656
        %v760 = vunpack.c.l.b16 %v657
        %v761 = vunpack.c.l.b16 %v658
        %v762 = vunpack.c.l.b16 %v659
        %v763 = vunpack.c.l.b16 %v660
        %v764 = vunpack.c.l.b16 %v661
        %v765 = vunpack.c.l.b16 %v662
        %v766 = vunpack.c.l.b16 %v663
        %v767 = vunpack.c.l.b16 %v664
        %v768 = vunpack.c.l.b16 %v665
        %v769 = vpack.c.b16 %v722, %v721
        %v770 = vpack.c.b16 %v724, %v723
        %v771 = vpack.c.b16 %v726, %v725
        %v772 = vpack.c.b16 %v728, %v727
        %v773 = vpack.c.b16 %v730, %v729
        %v774 = vpack.c.b16 %v732, %v731
        %v775 = vpack.c.b16 %v734, %v733
        %v776 = vpack.c.b16 %v736, %v735
        %v777 = vpack.c.b16 %v738, %v737
        %v778 = vpack.c.b16 %v740, %v739
        %v779 = vpack.c.b16 %v742, %v741
        %v780 = vpack.c.b16 %v744, %v743
        %v781 = vpack.c.b16 %v746, %v745
        %v782 = vpack.c.b16 %v748, %v747
        %v783 = vpack.c.b16 %v750, %v749
        %v784 = vpack.c.b16 %v752, %v751
        %v785 = vpack.c.b16 %v754, %v753
        %v786 = vpack.c.b16 %v756, %v755
        %v787 = vpack.c.b16 %v758, %v757
        %v788 = vpack.c.b16 %v760, %v759
        %v789 = vpack.c.b16 %v762, %v761
        %v790 = vpack.c.b16 %v764, %v763
        %v791 = vpack.c.b16 %v766, %v765
        %v792 = vpack.c.b16 %v768, %v767
        %817 = vmatprep.subr.bf16.mxu0 0
        %818 = vmatpush1.bf16.msra.mxu0 %v769
        %819 = vmatprep.subr.bf16.mxu0 0
        %820 = vmatpush1.bf16.msra.mxu0 %v770
        %821 = vmatprep.subr.bf16.mxu0 0
        %822 = vmatpush1.bf16.msra.mxu0 %v771
        %823 = vmatprep.subr.bf16.mxu0 0
        %824 = vmatpush1.bf16.msra.mxu0 %v772
        %825 = vmatprep.subr.bf16.mxu0 0
        %826 = vmatpush1.bf16.msra.mxu0 %v773
        %827 = vmatprep.subr.bf16.mxu0 0
        %828 = vmatpush1.bf16.msra.mxu0 %v774
        %829 = vmatprep.subr.bf16.mxu0 0
        %830 = vmatpush1.bf16.msra.mxu0 %v775
        %831 = vmatprep.subr.bf16.mxu0 0
        %832 = vmatpush1.bf16.msra.mxu0 %v776
        %833 = vmatprep.subr.bf16.mxu0 0
        %834 = vmatpush1.bf16.msra.mxu0 %v777
        %835 = vmatprep.subr.bf16.mxu0 0
        %836 = vmatpush1.bf16.msra.mxu0 %v778
        %837 = vmatprep.subr.bf16.mxu0 0
        %838 = vmatpush1.bf16.msra.mxu0 %v779
        %839 = vmatprep.subr.bf16.mxu0 0
        %840 = vmatpush1.bf16.msra.mxu0 %v780
        %841 = vmatprep.subr.bf16.mxu0 0
        %842 = vmatpush1.bf16.msra.mxu0 %v781
        %843 = vmatprep.subr.bf16.mxu0 0
        %844 = vmatpush1.bf16.msra.mxu0 %v782
        %845 = vmatprep.subr.bf16.mxu0 0
        %846 = vmatpush1.bf16.msra.mxu0 %v783
        %847 = vmatprep.subr.bf16.mxu0 0
        %848 = vmatpush1.bf16.msra.mxu0 %v784
        %849 = vmatprep.mubr.bf16.mxu0 %v616
        %850 = vmatmul.mubr.bf16.gmra.mrb[0].mxu0 %v615
        %v851 = vpop.f32.mrb[0].mxu0
        %v852 = vadd.f32 %v671, %v851
        %v853 = vpop.f32.mrb[0].mxu0
        %v854 = vpop.f32.mrb[0].mxu0
        %v855 = vadd.f32 %v671, %v854
        %v856 = vpop.f32.mrb[0].mxu0
        %857 = vdwg.mxu0
        %858 = vmatprep.subr.bf16.mxu0 0
        %859 = vmatpush1.bf16.msra.mxu0 %v785
        %860 = vmatprep.subr.bf16.mxu0 0
        %861 = vmatpush1.bf16.msra.mxu0 %v786
        %862 = vmatprep.subr.bf16.mxu0 0
        %863 = vmatpush1.bf16.msra.mxu0 %v787
        %864 = vmatprep.subr.bf16.mxu0 0
        %865 = vmatpush1.bf16.msra.mxu0 %v788
        %866 = vmatprep.subr.bf16.mxu0 0
        %867 = vmatpush1.bf16.msra.mxu0 %v789
        %868 = vmatprep.subr.bf16.mxu0 0
        %869 = vmatpush1.bf16.msra.mxu0 %v790
        %870 = vmatprep.subr.bf16.mxu0 0
        %871 = vmatpush1.bf16.msra.mxu0 %v791
        %872 = vmatprep.subr.bf16.mxu0 0
        %873 = vmatpush1.bf16.msra.mxu0 %v792
        %874 = vmatprep.subr.bf16.mxu0 0
        %875 = vmatpush1.bf16.msra.mxu0 0
        %876 = vmatprep.subr.bf16.mxu0 0
        %877 = vmatpush1.bf16.msra.mxu0 0
        %878 = vmatprep.subr.bf16.mxu0 0
        %879 = vmatpush1.bf16.msra.mxu0 0
        %880 = vmatprep.subr.bf16.mxu0 0
        %881 = vmatpush1.bf16.msra.mxu0 0
        %882 = vmatprep.subr.bf16.mxu0 0
        %883 = vmatpush1.bf16.msra.mxu0 0
        %884 = vmatprep.subr.bf16.mxu0 0
        %885 = vmatpush1.bf16.msra.mxu0 0
        %886 = vmatprep.subr.bf16.mxu0 0
        %887 = vmatpush1.bf16.msra.mxu0 0
        %888 = vmatprep.subr.bf16.mxu0 0
        %889 = vmatpush1.bf16.msra.mxu0 0
        %890 = vmatprep.mubr.bf16.mxu0 0
        %891 = vmatmul.mubr.bf16.gmra.mrb[0].mxu0 %v617
        %v892 = vpop.f32.mrb[0].mxu0
        %v893 = vadd.f32 %v852, %v892
        %v894 = vpop.f32.mrb[0].mxu0
        %v895 = vpop.f32.mrb[0].mxu0
        %v896 = vadd.f32 %v855, %v895
        %v897 = vpop.f32.mrb[0].mxu0
        %898 = vdwg.mxu0
        %v899 = vadd.f32 %v893, %v273
        %v900 = vadd.f32 %v896, %v274
        %v901 = vmax.f32 %v899, 0.0
        %v902 = vmax.f32 %v900, 0.0
        %903 = vst [vmem:[%s271] sm:$0xff] %v901
        %904 = vst [vmem:[%s271 + $0x8] sm:$0xff] %v902
        %s905 = sand.u32 %s141, 1
        %s906 = scalar_lea.sflag [#allocation6], %s905
        %s907 = sand.u32 %s141, 1
        %s908 = smul.addr %s907, 16
        %s909 = scalar_lea.vmem [#allocation10], %s908
        // Predicated region
        $region53: #{tpu_custom_call.1} parent=39 // pred_check
          %p910 = pneg %p151
        $region54: #{tpu_custom_call.1} parent=39 // pred_check_branch
          %912 = sbr.rel (%p910) target = $region56
        $region55: #{tpu_custom_call.1} parent=39 // pred_region
          %s914 = ssub.s32 256, 256
          %915 = vsyncadd %s906, %s914
          %s916 = smul.addr %s23, 2
          %s917 = smul.addr %s916, 128
          %s918 = scalar_lea.hbm %s5, %s917
          %s919 = sshll.u32 %s909, 4
          %s920 = int_to_ptr.vmem [resolvable:$true] %s919
          %925 = dma.vmem_to_hbm [thread:$0]  %s920, 256, %s918, %s906, 128, 128, 8
        $region56: #{tpu_custom_call.1} parent=39 // pred_fallthru
          _
      $region40: #{tpu_custom_call.1} parent=5 // pred_fallthru
        _
      %p926 = scmp.le.s32.totalorder 2, %s18
      // Predicated region
      $region57: #{tpu_custom_call.1} parent=5 // pred_check
        %p927 = pneg %p926
      $region58: #{tpu_custom_call.1} parent=5 // pred_check_branch
        %929 = sbr.rel (%p927) target = $region60
      $region59: #{tpu_custom_call.1} parent=5 // pred_region
        %s930 = ssub.s32 %s18, 2
        // Predicated region
        $region61: #{tpu_custom_call.1} parent=59 // pred_check
          %p931 = pneg %p157
        $region62: #{tpu_custom_call.1} parent=59 // pred_check_branch
          %933 = sbr.rel (%p931) target = $region64
        $region63: #{tpu_custom_call.1} parent=59 // pred_region
          %s934 = sand.u32 %s142, 1
          %s935 = scalar_lea.sflag [#allocation6], %s934
          %s936 = sand.u32 %s142, 1
          %s937 = smul.addr %s936, 16
          %s938 = scalar_lea.vmem [#allocation10], %s937
          %939 = dma.done %s935, 256
        $region64: #{tpu_custom_call.1} parent=59 // pred_fallthru
          _
      $region60: #{tpu_custom_call.1} parent=5 // pred_fallthru
        _
    $region6: #{tpu_custom_call.1} parent=1 // loop_footer
      %s22 = sadd.s32 1, %s18
    $region7: #{tpu_custom_call.1} parent=1 // loop_footer_branch
      %17 = sbr.rel target = $region3
    $region8: #{tpu_custom_call.1} parent=1 // loop_exit
      _
    %940 = vsyncpa [#allocation5], 1
    %s941 = scalar_lea.sflag [#allocation5], 1
    %942 = vsyncpa %s941, 1
    %943 = vsyncpa [#allocation8], 1
    %944 = vsyncpa [#allocation6], 1
    %s945 = scalar_lea.sflag [#allocation6], 1
    %946 = vsyncpa %s945, 1

</llo_original>
